<compile_context>
chip_gen: v7x
topology: tpu7x:2x2x1
jax: 0.10.0
libtpu: 0.0.40
codegen_flags: <defaults>
</compile_context>

<pallas_src>
import jax
import jax.numpy as jnp
from jax.experimental import pallas as pl
from jax.experimental.pallas import tpu as pltpu


def residual_block_kernel(x_ref, w1_ref, b1_ref, w2_ref, b2_ref, out_ref):
    # x_ref:   (Nb, H, W*Cin)        bf16  lane-dense NHWC input slab
    # w1_ref:  (3, W*Cin, 2*W*Cout)  bf16  per-kh banded conv1 weights (bn1 scale
    #          folded); columns = [conv1 | 1x1 downsample (center kh only)]
    # b1_ref:  (1, 2*W*Cout)         f32   [bn1 bias | bn_down bias]
    # w2_ref:  (3, W*Cout, W*Cout)   bf16  per-kh banded conv2 weights (bn2 scale folded)
    # b2_ref:  (1, W*Cout)           f32   bn2 bias
    # out_ref: (Nb, H, W*Cout)       bf16  lane-dense output slab
    Nb, H, WCin = x_ref.shape
    WC = out_ref.shape[2]
    M = Nb * H

    def shift_rows(t, up):
        # t: (M, K) f32, rows laid out as (image, h).  Shift by one row within
        # each image; zero at the image boundary (== conv zero padding).
        rows = jax.lax.broadcasted_iota(jnp.int32, t.shape, 0)
        if up:                                   # row r picks t[h-1]
            rolled = pltpu.roll(t, 1, 0)
            keep = (rows % H) != 0
        else:                                    # row r picks t[h+1]
            rolled = pltpu.roll(t, M - 1, 0)
            keep = (rows % H) != (H - 1)
        return jnp.where(keep, rolled, 0.0)

    x = x_ref[...].reshape(M, WCin)              # bf16
    x32 = x.astype(jnp.float32)
    x_up = shift_rows(x32, True).astype(jnp.bfloat16)
    x_dn = shift_rows(x32, False).astype(jnp.bfloat16)

    # ---- conv1 (3x3) + fused 1x1 downsample: three accumulating MXU pushes
    r1 = jnp.dot(x_up, w1_ref[0], preferred_element_type=jnp.float32)
    r1 += jnp.dot(x, w1_ref[1], preferred_element_type=jnp.float32)
    r1 += jnp.dot(x_dn, w1_ref[2], preferred_element_type=jnp.float32)
    r1 += b1_ref[...]
    mid = jnp.maximum(r1[:, :WC], 0.0)           # relu(bn1(conv1(x)))   f32
    ident = r1[:, WC:]                           # bn_d(conv1x1(x))      f32

    # ---- conv2 (3x3): three accumulating MXU pushes on row-shifted mid
    m_up = shift_rows(mid, True).astype(jnp.bfloat16)
    m_dn = shift_rows(mid, False).astype(jnp.bfloat16)
    acc2 = jnp.dot(m_up, w2_ref[0], preferred_element_type=jnp.float32)
    acc2 += jnp.dot(mid.astype(jnp.bfloat16), w2_ref[1],
                    preferred_element_type=jnp.float32)
    acc2 += jnp.dot(m_dn, w2_ref[2], preferred_element_type=jnp.float32)

    # ---- bn2 bias + residual add + relu; full-width lane-dense bf16 store
    res = jnp.maximum(acc2 + b2_ref[...] + ident, 0.0)
    out_ref[...] = res.reshape(Nb, H, WC).astype(out_ref.dtype)


def fold_bn(gamma, beta, mean, var, eps=1e-5):
    scale = gamma / jnp.sqrt(var + eps)
    bias = beta - mean * scale
    return scale.astype(jnp.float32), bias.astype(jnp.float32)


def _band(W):
    # band[kw, wi, wo] = 1 iff wi - wo == kw - 1   (3-wide conv, pad=1, stride=1)
    wi = jnp.arange(W)[None, :, None]
    wo = jnp.arange(W)[None, None, :]
    kw = jnp.arange(3)[:, None, None]
    return (wi - wo == kw - 1).astype(jnp.float32)


def residual_block_forward(x_nchw, params):
    """x_nchw: (N, Cin, H, W) float32. Returns (N, Cout, H, W) float32."""
    w1, bn1, w2, bn2, wd, bnd = params    # w1:(3,3,Cin,Cout) HWIO, wd:(Cin,Cout)
    N, Cin, H, W = x_nchw.shape
    Cout = w1.shape[-1]
    WC = W * Cout
    assert WC % 128 == 0, "lane-dense layout assumes W*Cout is a multiple of 128"

    # batch tile: fold Nb images into the MXU M dimension (target M ~ 128)
    target = max(1, 128 // H)
    Nb = 1
    for d in range(1, N + 1):
        if N % d == 0 and d <= target:
            Nb = d

    # lane-dense NHWC input; vertical halo rows are built in-kernel (no 3x dup)
    x_dense = jnp.transpose(x_nchw, (0, 2, 3, 1)).reshape(N, H, W * Cin)
    x_dense = x_dense.astype(jnp.bfloat16)

    # folded BN params; scales folded into weight columns, biases stay separate
    s1, b1 = fold_bn(*bn1)
    s2, b2 = fold_bn(*bn2)
    sd, bd = fold_bn(*bnd)
    col = lambda v: jnp.tile(v, W)                       # (WC,) per (wo, co) column

    band = _band(W)                                      # (3, W, W)
    # conv1 per-kh banded weights: A1[kh, wi*Cin+ci, wo*Cout+co] = w1[kh, wi-wo+1, ci, co]
    A1 = jnp.einsum('wab,kwio->kaibo', band, w1.astype(jnp.float32))
    A1 = A1.reshape(3, W * Cin, WC) * col(s1)[None, None, :]
    # 1x1 downsample fused as extra output columns of the center (kh=1) block
    D = jnp.einsum('ab,io->aibo', jnp.eye(W, dtype=jnp.float32),
                   wd.astype(jnp.float32)).reshape(W * Cin, WC) * col(sd)[None, :]
    Z = jnp.zeros_like(D)
    w1_big = jnp.stack([jnp.concatenate([A1[0], Z], axis=1),
                        jnp.concatenate([A1[1], D], axis=1),
                        jnp.concatenate([A1[2], Z], axis=1)]).astype(jnp.bfloat16)

    A2 = jnp.einsum('wab,kwio->kaibo', band, w2.astype(jnp.float32))
    w2_big = (A2.reshape(3, WC, WC) * col(s2)[None, None, :]).astype(jnp.bfloat16)

    b1_big = jnp.concatenate([col(b1), col(bd)]).reshape(1, 2 * WC)
    b2_big = col(b2).reshape(1, WC)

    out_dense = pl.pallas_call(
        residual_block_kernel,
        out_shape=jax.ShapeDtypeStruct((N, H, WC), jnp.bfloat16),
        grid_spec=pltpu.PrefetchScalarGridSpec(
            num_scalar_prefetch=0,
            grid=(N // Nb,),
            in_specs=[
                pl.BlockSpec((Nb, H, W * Cin), lambda n: (n, 0, 0)),
                pl.BlockSpec((3, W * Cin, 2 * WC), lambda n: (0, 0, 0)),
                pl.BlockSpec((1, 2 * WC), lambda n: (0, 0)),
                pl.BlockSpec((3, WC, WC), lambda n: (0, 0, 0)),
                pl.BlockSpec((1, WC), lambda n: (0, 0)),
            ],
            out_specs=pl.BlockSpec((Nb, H, WC), lambda n: (n, 0, 0)),
        ),
        compiler_params=pltpu.CompilerParams(
            dimension_semantics=("parallel",),
            vmem_limit_bytes=32 * 1024 * 1024),
    )(x_dense, w1_big, b1_big, w2_big, b2_big)

    out_nhwc = out_dense.astype(jnp.float32).reshape(N, H, W, Cout)
    return jnp.transpose(out_nhwc, (0, 3, 1, 2))


# ----------------------- pure-JAX reference ---------------------------------
def ref_forward(x_nchw, params):
    # Mirrors the kernel's bf16 MXU inputs (f32 accumulation); BN is the same
    # folded inference-mode scale/bias.
    w1, bn1, w2, bn2, wd, bnd = params
    q = lambda a: a.astype(jnp.bfloat16).astype(jnp.float32)
    x = q(jnp.transpose(x_nchw, (0, 2, 3, 1)).astype(jnp.float32))   # NHWC

    def conv(t, w_hwio):
        return jax.lax.conv_general_dilated(
            t, q(w_hwio), window_strides=(1, 1), padding='SAME',
            dimension_numbers=('NHWC', 'HWIO', 'NHWC'))

    def bn(t, p):
        s, b = fold_bn(*p)
        return t * s + b

    identity = bn(conv(x, wd[None, None]), bnd)
    out = jax.nn.relu(bn(conv(x, w1), bn1))
    out = bn(conv(q(out), w2), bn2)
    out = jax.nn.relu(out + identity)
    return jnp.transpose(out, (0, 3, 1, 2))


# ----------------------- deterministic params -------------------------------
def make_params(key, cin, cout):
    ks = jax.random.split(key, 12)

    def bn_params(k0, k1, k2, k3, c):
        gamma = 0.5 + jax.random.uniform(k0, (c,), jnp.float32)
        beta = 0.1 * jax.random.normal(k1, (c,), jnp.float32)
        mean = 0.1 * jax.random.normal(k2, (c,), jnp.float32)
        var = 0.5 + jax.random.uniform(k3, (c,), jnp.float32)
        return gamma, beta, mean, var

    w1 = 0.1 * jax.random.normal(ks[0], (3, 3, cin, cout), jnp.float32)   # HWIO
    w2 = 0.1 * jax.random.normal(ks[1], (3, 3, cout, cout), jnp.float32)  # HWIO
    wd = 0.1 * jax.random.normal(ks[2], (cin, cout), jnp.float32)         # 1x1, IO
    bn1 = bn_params(ks[3], ks[4], ks[5], ks[6], cout)
    bn2 = bn_params(ks[7], ks[8], ks[9], ks[10], cout)
    bnd = bn_params(*jax.random.split(ks[11], 4), cout)
    return (w1, bn1, w2, bn2, wd, bnd)


if __name__ == "__main__":
    key = jax.random.PRNGKey(0)
    kx, kp = jax.random.split(key)

    N, Cin, H, W = 2, 4, 16, 16
    Cout = 8  # in_channel != out_channel -> downsample path active (stride=1)

    x = jax.random.normal(kx, (N, Cin, H, W), jnp.float32)
    params = make_params(kp, Cin, Cout)

    out = jax.block_until_ready(residual_block_forward(x, params))
    ref = ref_forward(x, params)

    assert out.shape == (N, Cout, H, W)
    max_err = float(jnp.max(jnp.abs(out - ref)))
    # bf16 MXU inputs/weights (scale-folded) + bf16 output store vs f32 ref
    assert jnp.allclose(out, ref, rtol=5e-2, atol=5e-2), max_err

    print("KERNEL_OK")
</pallas_src>

<mosaic_0001>
module attributes {stable_mosaic.version = 11 : i64} {
  func.func @residual_block_kernel(%arg0: i32, %arg1: memref<2x16x64xbf16, #tpu.memory_space<vmem>>, %arg2: memref<3x64x256xbf16, #tpu.memory_space<vmem>>, %arg3: memref<1x256xf32, #tpu.memory_space<vmem>>, %arg4: memref<3x128x128xbf16, #tpu.memory_space<vmem>>, %arg5: memref<1x128xf32, #tpu.memory_space<vmem>>, %arg6: memref<2x16x128xbf16, #tpu.memory_space<vmem>>) attributes {dimension_semantics = [#tpu.dimension_semantics<parallel>], iteration_bounds = array<i64: 1>, scalar_prefetch = 0 : i64, scratch_operands = 0 : i64, tpu.core_type = #tpu.core_type<tc>, window_params = [{transform_indices = @transform_0, window_bounds = array<i64: 2, 16, 64>}, {pipeline_mode = #tpu.pipeline_mode<synchronous>, transform_indices = @transform_1, window_bounds = array<i64: 3, 64, 256>}, {pipeline_mode = #tpu.pipeline_mode<synchronous>, transform_indices = @transform_2, window_bounds = array<i64: 1, 256>}, {pipeline_mode = #tpu.pipeline_mode<synchronous>, transform_indices = @transform_3, window_bounds = array<i64: 3, 128, 128>}, {pipeline_mode = #tpu.pipeline_mode<synchronous>, transform_indices = @transform_4, window_bounds = array<i64: 1, 128>}, {transform_indices = @transform_5, window_bounds = array<i64: 2, 16, 128>}]} {
    %c0 = arith.constant 0 : index
    %c0_0 = arith.constant 0 : index
    %c0_1 = arith.constant 0 : index
    %0 = vector.load %arg1[%c0, %c0_0, %c0_1] : memref<2x16x64xbf16, #tpu.memory_space<vmem>>, vector<2x16x64xbf16>
    %1 = vector.shape_cast %0 : vector<2x16x64xbf16> to vector<32x64xbf16>
    %2 = arith.extf %1 : vector<32x64xbf16> to vector<32x64xf32>
    %3 = tpu.iota {dimensions = array<i32: 0>} : vector<32x64xi32>
    %c1_i32 = arith.constant 1 : i32
    %4 = tpu.dynamic_rotate %2 by %c1_i32 dim 0 : vector<32x64xf32>, i32 -> vector<32x64xf32>
    %c16_i32 = arith.constant 16 : i32
    %c0_i32 = arith.constant 0 : i32
    %5 = arith.cmpi eq, %c16_i32, %c0_i32 : i32
    %c1_i32_2 = arith.constant 1 : i32
    %6 = arith.select %5, %c1_i32_2, %c16_i32 : i32
    %7 = vector.broadcast %6 : i32 to vector<32x64xi32>
    %8 = arith.remsi %3, %7 : vector<32x64xi32>
    %c0_i32_3 = arith.constant 0 : i32
    %9 = vector.broadcast %c0_i32_3 : i32 to vector<32x64xi32>
    %10 = arith.cmpi ne, %8, %9 : vector<32x64xi32>
    %c0_i32_4 = arith.constant 0 : i32
    %11 = vector.broadcast %c0_i32_4 : i32 to vector<32x64xi32>
    %12 = arith.cmpi slt, %8, %11 : vector<32x64xi32>
    %c0_i32_5 = arith.constant 0 : i32
    %13 = arith.cmpi slt, %6, %c0_i32_5 : i32
    %14 = vector.broadcast %13 : i1 to vector<32x64xi1>
    %15 = vector.broadcast %14 : vector<32x64xi1> to vector<32x64xi1>
    %16 = arith.xori %12, %15 : vector<32x64xi1>
    %17 = arith.andi %16, %10 : vector<32x64xi1>
    %18 = vector.broadcast %6 : i32 to vector<32x64xi32>
    %19 = arith.addi %8, %18 : vector<32x64xi32>
    %20 = arith.select %17, %19, %8 : vector<32x64xi1>, vector<32x64xi32>
    %c0_i32_6 = arith.constant 0 : i32
    %21 = vector.broadcast %c0_i32_6 : i32 to vector<32x64xi32>
    %22 = arith.cmpi ne, %20, %21 : vector<32x64xi32>
    %cst = arith.constant 0.000000e+00 : f32
    %23 = vector.broadcast %cst : f32 to vector<32x64xf32>
    %24 = arith.select %22, %4, %23 : vector<32x64xi1>, vector<32x64xf32>
    %25 = arith.truncf %24 : vector<32x64xf32> to vector<32x64xbf16>
    %26 = tpu.iota {dimensions = array<i32: 0>} : vector<32x64xi32>
    %c31_i32 = arith.constant 31 : i32
    %27 = tpu.dynamic_rotate %2 by %c31_i32 dim 0 : vector<32x64xf32>, i32 -> vector<32x64xf32>
    %c16_i32_7 = arith.constant 16 : i32
    %c0_i32_8 = arith.constant 0 : i32
    %28 = arith.cmpi eq, %c16_i32_7, %c0_i32_8 : i32
    %c1_i32_9 = arith.constant 1 : i32
    %29 = arith.select %28, %c1_i32_9, %c16_i32_7 : i32
    %30 = vector.broadcast %29 : i32 to vector<32x64xi32>
    %31 = arith.remsi %26, %30 : vector<32x64xi32>
    %c0_i32_10 = arith.constant 0 : i32
    %32 = vector.broadcast %c0_i32_10 : i32 to vector<32x64xi32>
    %33 = arith.cmpi ne, %31, %32 : vector<32x64xi32>
    %c0_i32_11 = arith.constant 0 : i32
    %34 = vector.broadcast %c0_i32_11 : i32 to vector<32x64xi32>
    %35 = arith.cmpi slt, %31, %34 : vector<32x64xi32>
    %c0_i32_12 = arith.constant 0 : i32
    %36 = arith.cmpi slt, %29, %c0_i32_12 : i32
    %37 = vector.broadcast %36 : i1 to vector<32x64xi1>
    %38 = vector.broadcast %37 : vector<32x64xi1> to vector<32x64xi1>
    %39 = arith.xori %35, %38 : vector<32x64xi1>
    %40 = arith.andi %39, %33 : vector<32x64xi1>
    %41 = vector.broadcast %29 : i32 to vector<32x64xi32>
    %42 = arith.addi %31, %41 : vector<32x64xi32>
    %43 = arith.select %40, %42, %31 : vector<32x64xi1>, vector<32x64xi32>
    %c15_i32 = arith.constant 15 : i32
    %44 = vector.broadcast %c15_i32 : i32 to vector<32x64xi32>
    %45 = arith.cmpi ne, %43, %44 : vector<32x64xi32>
    %cst_13 = arith.constant 0.000000e+00 : f32
    %46 = vector.broadcast %cst_13 : f32 to vector<32x64xf32>
    %47 = arith.select %45, %27, %46 : vector<32x64xi1>, vector<32x64xf32>
    %48 = arith.truncf %47 : vector<32x64xf32> to vector<32x64xbf16>
    %c0_14 = arith.constant 0 : index
    %c0_15 = arith.constant 0 : index
    %c0_16 = arith.constant 0 : index
    %49 = vector.load %arg2[%c0_14, %c0_15, %c0_16] : memref<3x64x256xbf16, #tpu.memory_space<vmem>>, vector<1x64x256xbf16>
    %50 = vector.shape_cast %49 : vector<1x64x256xbf16> to vector<64x256xbf16>
    %cst_17 = arith.constant dense<0.000000e+00> : vector<32x256xf32>
    %51 = tpu.matmul %25, %50, %cst_17 {dimension_numbers = #tpu.dot_dimension_numbers<[1], [0], [0], [1], [0, 0, 1, 1], [], []>} : vector<32x64xbf16>, vector<64x256xbf16>, vector<32x256xf32> -> vector<32x256xf32>
    %c1 = arith.constant 1 : index
    %c0_18 = arith.constant 0 : index
    %c0_19 = arith.constant 0 : index
    %52 = vector.load %arg2[%c1, %c0_18, %c0_19] : memref<3x64x256xbf16, #tpu.memory_space<vmem>>, vector<1x64x256xbf16>
    %53 = vector.shape_cast %52 : vector<1x64x256xbf16> to vector<64x256xbf16>
    %cst_20 = arith.constant dense<0.000000e+00> : vector<32x256xf32>
    %54 = tpu.matmul %1, %53, %cst_20 {dimension_numbers = #tpu.dot_dimension_numbers<[1], [0], [0], [1], [0, 0, 1, 1], [], []>} : vector<32x64xbf16>, vector<64x256xbf16>, vector<32x256xf32> -> vector<32x256xf32>
    %55 = arith.addf %51, %54 : vector<32x256xf32>
    %c2 = arith.constant 2 : index
    %c0_21 = arith.constant 0 : index
    %c0_22 = arith.constant 0 : index
    %56 = vector.load %arg2[%c2, %c0_21, %c0_22] : memref<3x64x256xbf16, #tpu.memory_space<vmem>>, vector<1x64x256xbf16>
    %57 = vector.shape_cast %56 : vector<1x64x256xbf16> to vector<64x256xbf16>
    %cst_23 = arith.constant dense<0.000000e+00> : vector<32x256xf32>
    %58 = tpu.matmul %48, %57, %cst_23 {dimension_numbers = #tpu.dot_dimension_numbers<[1], [0], [0], [1], [0, 0, 1, 1], [], []>} : vector<32x64xbf16>, vector<64x256xbf16>, vector<32x256xf32> -> vector<32x256xf32>
    %59 = arith.addf %55, %58 : vector<32x256xf32>
    %c0_24 = arith.constant 0 : index
    %c0_25 = arith.constant 0 : index
    %60 = vector.load %arg3[%c0_24, %c0_25] : memref<1x256xf32, #tpu.memory_space<vmem>>, vector<1x256xf32>
    %61 = vector.broadcast %60 : vector<1x256xf32> to vector<32x256xf32>
    %62 = arith.addf %59, %61 : vector<32x256xf32>
    %63 = vector.extract_strided_slice %62 {offsets = [0, 0], sizes = [32, 128], strides = [1, 1]} : vector<32x256xf32> to vector<32x128xf32>
    %cst_26 = arith.constant 0.000000e+00 : f32
    %64 = vector.broadcast %cst_26 : f32 to vector<32x128xf32>
    %65 = arith.maximumf %63, %64 : vector<32x128xf32>
    %66 = vector.extract_strided_slice %62 {offsets = [0, 128], sizes = [32, 128], strides = [1, 1]} : vector<32x256xf32> to vector<32x128xf32>
    %67 = tpu.iota {dimensions = array<i32: 0>} : vector<32x128xi32>
    %c1_i32_27 = arith.constant 1 : i32
    %68 = tpu.dynamic_rotate %65 by %c1_i32_27 dim 0 : vector<32x128xf32>, i32 -> vector<32x128xf32>
    %c16_i32_28 = arith.constant 16 : i32
    %c0_i32_29 = arith.constant 0 : i32
    %69 = arith.cmpi eq, %c16_i32_28, %c0_i32_29 : i32
    %c1_i32_30 = arith.constant 1 : i32
    %70 = arith.select %69, %c1_i32_30, %c16_i32_28 : i32
    %71 = vector.broadcast %70 : i32 to vector<32x128xi32>
    %72 = arith.remsi %67, %71 : vector<32x128xi32>
    %c0_i32_31 = arith.constant 0 : i32
    %73 = vector.broadcast %c0_i32_31 : i32 to vector<32x128xi32>
    %74 = arith.cmpi ne, %72, %73 : vector<32x128xi32>
    %c0_i32_32 = arith.constant 0 : i32
    %75 = vector.broadcast %c0_i32_32 : i32 to vector<32x128xi32>
    %76 = arith.cmpi slt, %72, %75 : vector<32x128xi32>
    %c0_i32_33 = arith.constant 0 : i32
    %77 = arith.cmpi slt, %70, %c0_i32_33 : i32
    %78 = vector.broadcast %77 : i1 to vector<32x128xi1>
    %79 = vector.broadcast %78 : vector<32x128xi1> to vector<32x128xi1>
    %80 = arith.xori %76, %79 : vector<32x128xi1>
    %81 = arith.andi %80, %74 : vector<32x128xi1>
    %82 = vector.broadcast %70 : i32 to vector<32x128xi32>
    %83 = arith.addi %72, %82 : vector<32x128xi32>
    %84 = arith.select %81, %83, %72 : vector<32x128xi1>, vector<32x128xi32>
    %c0_i32_34 = arith.constant 0 : i32
    %85 = vector.broadcast %c0_i32_34 : i32 to vector<32x128xi32>
    %86 = arith.cmpi ne, %84, %85 : vector<32x128xi32>
    %cst_35 = arith.constant 0.000000e+00 : f32
    %87 = vector.broadcast %cst_35 : f32 to vector<32x128xf32>
    %88 = arith.select %86, %68, %87 : vector<32x128xi1>, vector<32x128xf32>
    %89 = arith.truncf %88 : vector<32x128xf32> to vector<32x128xbf16>
    %90 = tpu.iota {dimensions = array<i32: 0>} : vector<32x128xi32>
    %c31_i32_36 = arith.constant 31 : i32
    %91 = tpu.dynamic_rotate %65 by %c31_i32_36 dim 0 : vector<32x128xf32>, i32 -> vector<32x128xf32>
    %c16_i32_37 = arith.constant 16 : i32
    %c0_i32_38 = arith.constant 0 : i32
    %92 = arith.cmpi eq, %c16_i32_37, %c0_i32_38 : i32
    %c1_i32_39 = arith.constant 1 : i32
    %93 = arith.select %92, %c1_i32_39, %c16_i32_37 : i32
    %94 = vector.broadcast %93 : i32 to vector<32x128xi32>
    %95 = arith.remsi %90, %94 : vector<32x128xi32>
    %c0_i32_40 = arith.constant 0 : i32
    %96 = vector.broadcast %c0_i32_40 : i32 to vector<32x128xi32>
    %97 = arith.cmpi ne, %95, %96 : vector<32x128xi32>
    %c0_i32_41 = arith.constant 0 : i32
    %98 = vector.broadcast %c0_i32_41 : i32 to vector<32x128xi32>
    %99 = arith.cmpi slt, %95, %98 : vector<32x128xi32>
    %c0_i32_42 = arith.constant 0 : i32
    %100 = arith.cmpi slt, %93, %c0_i32_42 : i32
    %101 = vector.broadcast %100 : i1 to vector<32x128xi1>
    %102 = vector.broadcast %101 : vector<32x128xi1> to vector<32x128xi1>
    %103 = arith.xori %99, %102 : vector<32x128xi1>
    %104 = arith.andi %103, %97 : vector<32x128xi1>
    %105 = vector.broadcast %93 : i32 to vector<32x128xi32>
    %106 = arith.addi %95, %105 : vector<32x128xi32>
    %107 = arith.select %104, %106, %95 : vector<32x128xi1>, vector<32x128xi32>
    %c15_i32_43 = arith.constant 15 : i32
    %108 = vector.broadcast %c15_i32_43 : i32 to vector<32x128xi32>
    %109 = arith.cmpi ne, %107, %108 : vector<32x128xi32>
    %cst_44 = arith.constant 0.000000e+00 : f32
    %110 = vector.broadcast %cst_44 : f32 to vector<32x128xf32>
    %111 = arith.select %109, %91, %110 : vector<32x128xi1>, vector<32x128xf32>
    %112 = arith.truncf %111 : vector<32x128xf32> to vector<32x128xbf16>
    %c0_45 = arith.constant 0 : index
    %c0_46 = arith.constant 0 : index
    %c0_47 = arith.constant 0 : index
    %113 = vector.load %arg4[%c0_45, %c0_46, %c0_47] : memref<3x128x128xbf16, #tpu.memory_space<vmem>>, vector<1x128x128xbf16>
    %114 = vector.shape_cast %113 : vector<1x128x128xbf16> to vector<128x128xbf16>
    %cst_48 = arith.constant dense<0.000000e+00> : vector<32x128xf32>
    %115 = tpu.matmul %89, %114, %cst_48 {dimension_numbers = #tpu.dot_dimension_numbers<[1], [0], [0], [1], [0, 0, 1, 1], [], []>} : vector<32x128xbf16>, vector<128x128xbf16>, vector<32x128xf32> -> vector<32x128xf32>
    %116 = arith.truncf %65 : vector<32x128xf32> to vector<32x128xbf16>
    %c1_49 = arith.constant 1 : index
    %c0_50 = arith.constant 0 : index
    %c0_51 = arith.constant 0 : index
    %117 = vector.load %arg4[%c1_49, %c0_50, %c0_51] : memref<3x128x128xbf16, #tpu.memory_space<vmem>>, vector<1x128x128xbf16>
    %118 = vector.shape_cast %117 : vector<1x128x128xbf16> to vector<128x128xbf16>
    %cst_52 = arith.constant dense<0.000000e+00> : vector<32x128xf32>
    %119 = tpu.matmul %116, %118, %cst_52 {dimension_numbers = #tpu.dot_dimension_numbers<[1], [0], [0], [1], [0, 0, 1, 1], [], []>} : vector<32x128xbf16>, vector<128x128xbf16>, vector<32x128xf32> -> vector<32x128xf32>
    %120 = arith.addf %115, %119 : vector<32x128xf32>
    %c2_53 = arith.constant 2 : index
    %c0_54 = arith.constant 0 : index
    %c0_55 = arith.constant 0 : index
    %121 = vector.load %arg4[%c2_53, %c0_54, %c0_55] : memref<3x128x128xbf16, #tpu.memory_space<vmem>>, vector<1x128x128xbf16>
    %122 = vector.shape_cast %121 : vector<1x128x128xbf16> to vector<128x128xbf16>
    %cst_56 = arith.constant dense<0.000000e+00> : vector<32x128xf32>
    %123 = tpu.matmul %112, %122, %cst_56 {dimension_numbers = #tpu.dot_dimension_numbers<[1], [0], [0], [1], [0, 0, 1, 1], [], []>} : vector<32x128xbf16>, vector<128x128xbf16>, vector<32x128xf32> -> vector<32x128xf32>
    %124 = arith.addf %120, %123 : vector<32x128xf32>
    %c0_57 = arith.constant 0 : index
    %c0_58 = arith.constant 0 : index
    %125 = vector.load %arg5[%c0_57, %c0_58] : memref<1x128xf32, #tpu.memory_space<vmem>>, vector<1x128xf32>
    %126 = vector.broadcast %125 : vector<1x128xf32> to vector<32x128xf32>
    %127 = arith.addf %124, %126 : vector<32x128xf32>
    %128 = arith.addf %127, %66 : vector<32x128xf32>
    %cst_59 = arith.constant 0.000000e+00 : f32
    %129 = vector.broadcast %cst_59 : f32 to vector<32x128xf32>
    %130 = arith.maximumf %128, %129 : vector<32x128xf32>
    %131 = vector.shape_cast %130 : vector<32x128xf32> to vector<2x16x128xf32>
    %132 = arith.truncf %131 : vector<2x16x128xf32> to vector<2x16x128xbf16>
    %c0_60 = arith.constant 0 : index
    %c0_61 = arith.constant 0 : index
    %c0_62 = arith.constant 0 : index
    %133 = vector.load %arg6[%c0_60, %c0_61, %c0_62] : memref<2x16x128xbf16, #tpu.memory_space<vmem>>, vector<2x16x128xbf16>
    tpu.vector_store %arg6[%c0_60, %c0_61, %c0_62], %132 {strides = array<i32>} : memref<2x16x128xbf16, #tpu.memory_space<vmem>>, vector<2x16x128xbf16>,
    return
  }
  func.func @transform_0(%arg0: i32) -> (i32, i32, i32) {
    %c0_i32 = arith.constant 0 : i32
    %c0_i32_0 = arith.constant 0 : i32
    %c0_i32_1 = arith.constant 0 : i32
    return %arg0, %c0_i32, %c0_i32_0 : i32, i32, i32
  }
  func.func @transform_1(%arg0: i32) -> (i32, i32, i32) {
    %c0_i32 = arith.constant 0 : i32
    %c0_i32_0 = arith.constant 0 : i32
    %c0_i32_1 = arith.constant 0 : i32
    %c0_i32_2 = arith.constant 0 : i32
    return %c0_i32, %c0_i32_0, %c0_i32_1 : i32, i32, i32
  }
  func.func @transform_2(%arg0: i32) -> (i32, i32) {
    %c0_i32 = arith.constant 0 : i32
    %c0_i32_0 = arith.constant 0 : i32
    %c0_i32_1 = arith.constant 0 : i32
    return %c0_i32, %c0_i32_0 : i32, i32
  }
  func.func @transform_3(%arg0: i32) -> (i32, i32, i32) {
    %c0_i32 = arith.constant 0 : i32
    %c0_i32_0 = arith.constant 0 : i32
    %c0_i32_1 = arith.constant 0 : i32
    %c0_i32_2 = arith.constant 0 : i32
    return %c0_i32, %c0_i32_0, %c0_i32_1 : i32, i32, i32
  }
  func.func @transform_4(%arg0: i32) -> (i32, i32) {
    %c0_i32 = arith.constant 0 : i32
    %c0_i32_0 = arith.constant 0 : i32
    %c0_i32_1 = arith.constant 0 : i32
    return %c0_i32, %c0_i32_0 : i32, i32
  }
  func.func @transform_5(%arg0: i32) -> (i32, i32, i32) {
    %c0_i32 = arith.constant 0 : i32
    %c0_i32_0 = arith.constant 0 : i32
    %c0_i32_1 = arith.constant 0 : i32
    return %arg0, %c0_i32, %c0_i32_0 : i32, i32, i32
  }
}

</mosaic_0001>

<llo_original>
// kernel: tpu_custom_call.1
$region0: #{tpu_custom_call.1}
  #allocation0 [shape = 'u32[]', space=smem, size = 0x4, offset = 0x4, fixed_abs, tag = 'smem constant byte address 0x4 - core index']
  #allocation1 [shape = 'u32[144,128]{1,0:T(1,128)}', space=vmem, size = 0x12000, scoped, tag = 'internal scratch']
  %s0 = inlined_call_operand.hbm [shape: bf16[2,16,64], index: 0, kind: input, shape index: {}]
  %s1 = inlined_call_operand.hbm [shape: bf16[3,64,256], index: 1, kind: input, shape index: {}]
  %s2 = inlined_call_operand.vmem [shape: f32[1,256], index: 2, kind: input, shape index: {}]
  %s3 = inlined_call_operand.hbm [shape: bf16[3,128,128], index: 3, kind: input, shape index: {}]
  %s4 = inlined_call_operand.vmem [shape: f32[1,128], index: 4, kind: input, shape index: {}]
  %s5 = inlined_call_operand.hbm [shape: bf16[2,16,128], index: 5, kind: output, shape index: {}]
  %s6 = sld [smem:[#allocation0]]
  $region42: #{tpu_custom_call.1} parent=0
    _
  %s8 = ssub.s32 1, %s6
  %s9 = scalar_select 0, %s8, %s6
  $region1: #{tpu_custom_call.1} parent=0
    #allocation2 [shape = 'u8[8192]{0}', space=vmem, size = 0x2000, scoped, tag = 'input window, operand 0, single buffered']
    #allocation3 [shape = 's32[1]{0}', space=sflag, size = 0x4, scoped, tag = 'scoped memory for tpu_custom_call.1']
    #allocation4 [shape = 's32[1]{0}', space=sflag, size = 0x4, scoped, tag = 'scoped memory for tpu_custom_call.1']
    #allocation5 [shape = 'u8[98304]{0}', space=vmem, size = 0x18000, scoped, tag = 'input window, operand 1, single buffered']
    #allocation6 [shape = 's32[1]{0}', space=sflag, size = 0x4, scoped, tag = 'scoped memory for tpu_custom_call.1']
    #allocation7 [shape = 'u8[98304]{0}', space=vmem, size = 0x18000, scoped, tag = 'input window, operand 3, single buffered']
    #allocation8 [shape = 'u8[8192]{0}', space=vmem, size = 0x2000, scoped, tag = 'output window, operand 0, single buffered']
    %10 = vsyncpa [#allocation3], 0
    %11 = vsyncpa [#allocation6], 0
    %12 = vsyncpa [#allocation4], 0
    // Predicated region
    $region2: #{tpu_custom_call.1} parent=1 // pred_check
      _
    $region3: #{tpu_custom_call.1} parent=1 // pred_check_branch
      %14 = sbr.rel (0) target = $region5
    $region4: #{tpu_custom_call.1} parent=1 // pred_region
      %s16 = ssub.s32 256, 256
      %17 = vsyncadd [#allocation3], %s16
      %s18 = sshll.u32 [#allocation2], 4
      %s19 = int_to_ptr.vmem [resolvable:$true] %s18
      %24 = dma.hbm_to_vmem [thread:$0]  %s0, 256, %s19, [#allocation3], 64, 64, 4
    $region5: #{tpu_custom_call.1} parent=1 // pred_fallthru
      _
    // Predicated region
    $region6: #{tpu_custom_call.1} parent=1 // pred_check
      _
    $region7: #{tpu_custom_call.1} parent=1 // pred_check_branch
      %26 = sbr.rel (0) target = $region9
    $region8: #{tpu_custom_call.1} parent=1 // pred_region
      %s28 = ssub.s32 3072, 3072
      %29 = vsyncadd [#allocation6], %s28
      %s30 = sshll.u32 [#allocation5], 4
      %s31 = int_to_ptr.vmem [resolvable:$true] %s30
      %36 = dma.hbm_to_vmem [thread:$0]  %s1, 3072, %s31, [#allocation6], 128, 128, 8
    $region9: #{tpu_custom_call.1} parent=1 // pred_fallthru
      _
    // Predicated region
    $region10: #{tpu_custom_call.1} parent=1 // pred_check
      _
    $region11: #{tpu_custom_call.1} parent=1 // pred_check_branch
      %38 = sbr.rel (0) target = $region13
    $region12: #{tpu_custom_call.1} parent=1 // pred_region
      _
    $region13: #{tpu_custom_call.1} parent=1 // pred_fallthru
      _
    // Predicated region
    $region14: #{tpu_custom_call.1} parent=1 // pred_check
      _
    $region15: #{tpu_custom_call.1} parent=1 // pred_check_branch
      %40 = sbr.rel (0) target = $region17
    $region16: #{tpu_custom_call.1} parent=1 // pred_region
      %s42 = ssub.s32 3072, 3072
      %43 = vsyncadd [#allocation6], %s42
      %s44 = sshll.u32 [#allocation7], 4
      %s45 = int_to_ptr.vmem [resolvable:$true] %s44
      %50 = dma.hbm_to_vmem [thread:$0]  %s3, 3072, %s45, [#allocation6], 64, 64, 4
    $region17: #{tpu_custom_call.1} parent=1 // pred_fallthru
      _
    // Predicated region
    $region18: #{tpu_custom_call.1} parent=1 // pred_check
      _
    $region19: #{tpu_custom_call.1} parent=1 // pred_check_branch
      %52 = sbr.rel (0) target = $region21
    $region20: #{tpu_custom_call.1} parent=1 // pred_region
      _
    $region21: #{tpu_custom_call.1} parent=1 // pred_fallthru
      _
    // Predicated region
    $region22: #{tpu_custom_call.1} parent=1 // pred_check
      _
    $region23: #{tpu_custom_call.1} parent=1 // pred_check_branch
      %54 = sbr.rel (0) target = $region25
    $region24: #{tpu_custom_call.1} parent=1 // pred_region
      %55 = dma.done [#allocation3], 256
    $region25: #{tpu_custom_call.1} parent=1 // pred_fallthru
      _
    // Predicated region
    $region26: #{tpu_custom_call.1} parent=1 // pred_check
      _
    $region27: #{tpu_custom_call.1} parent=1 // pred_check_branch
      %57 = sbr.rel (0) target = $region29
    $region28: #{tpu_custom_call.1} parent=1 // pred_region
      %58 = dma.done [#allocation6], 3072
    $region29: #{tpu_custom_call.1} parent=1 // pred_fallthru
      _
    // Predicated region
    $region30: #{tpu_custom_call.1} parent=1 // pred_check
      _
    $region31: #{tpu_custom_call.1} parent=1 // pred_check_branch
      %60 = sbr.rel (0) target = $region33
    $region32: #{tpu_custom_call.1} parent=1 // pred_region
      %61 = dma.done [#allocation6], 3072
    $region33: #{tpu_custom_call.1} parent=1 // pred_fallthru
      _
    %v63 = vld [vmem:[#allocation2] sm:$0xf]
    %v64 = vld [vmem:[#allocation2 + $0x4] sm:$0xf]
    %v65 = vld [vmem:[#allocation2 + $0x8] sm:$0xf]
    %v66 = vld [vmem:[#allocation2 + $0xc] sm:$0xf]
    %v67 = vunpack.c.l.bf16 %v63
    %v68 = vunpack.c.l.bf16 %v64
    %v69 = vunpack.c.l.bf16 %v65
    %v70 = vunpack.c.l.bf16 %v66
    %v71 = vlaneseq
    %v72 = vshrl.u32 %v71, 7
    %v73 = vadd.s32 %v72, 8
    %v74 = vadd.s32 %v72, 16
    %v75 = vadd.s32 %v72, 24
    %v76 = vrot.slane %v67, 7
    %v77 = vrot.slane %v68, 7
    %v78 = vrot.slane %v69, 7
    %v79 = vrot.slane %v70, 7
    %vm80 = vcmp.lt.s32.totalorder %v72, 1
    %v81 = vsel %vm80, %v78, %v79
    %v82 = vsel %vm80, %v77, %v78
    %v83 = vsel %vm80, %v76, %v77
    %v84 = vsel %vm80, %v79, %v76
    %vm85 = vcmp.lt.s32.totalorder %v72, 0
    %v86 = vsub.s32 0, %v72
    %v87 = vsel %vm85, %v86, %v72
    %v88 = vshrl.u32 %v87, 4
    %v89 = vand.u32 %v87, 15
    %v90 = vsub.s32 0, %v89
    %v91 = vsel %vm85, %v90, %v89
    %vm92 = vcmp.lt.s32.totalorder %v73, 0
    %v93 = vsub.s32 0, %v73
    %v94 = vsel %vm92, %v93, %v73
    %v95 = vshrl.u32 %v94, 4
    %v96 = vand.u32 %v94, 15
    %v97 = vsub.s32 0, %v96
    %v98 = vsel %vm92, %v97, %v96
    %vm99 = vcmp.lt.s32.totalorder %v74, 0
    %v100 = vsub.s32 0, %v74
    %v101 = vsel %vm99, %v100, %v74
    %v102 = vshrl.u32 %v101, 4
    %v103 = vand.u32 %v101, 15
    %v104 = vsub.s32 0, %v103
    %v105 = vsel %vm99, %v104, %v103
    %vm106 = vcmp.lt.s32.totalorder %v75, 0
    %v107 = vsub.s32 0, %v75
    %v108 = vsel %vm106, %v107, %v75
    %v109 = vshrl.u32 %v108, 4
    %v110 = vand.u32 %v108, 15
    %v111 = vsub.s32 0, %v110
    %v112 = vsel %vm106, %v111, %v110
    %vm113 = vcmp.ne.s32.totalorder %v91, 0
    %vm114 = vcmp.ne.s32.totalorder %v98, 0
    %vm115 = vcmp.ne.s32.totalorder %v105, 0
    %vm116 = vcmp.ne.s32.totalorder %v112, 0
    %vm117 = vcmp.lt.s32.totalorder %v91, 0
    %vm118 = vcmp.lt.s32.totalorder %v98, 0
    %vm119 = vcmp.lt.s32.totalorder %v105, 0
    %vm120 = vcmp.lt.s32.totalorder %v112, 0
    %vm121 = vmand %vm117, %vm113
    %vm122 = vmand %vm118, %vm114
    %vm123 = vmand %vm119, %vm115
    %vm124 = vmand %vm120, %vm116
    %v125 = vadd.s32 %v91, 16
    %v126 = vadd.s32 %v98, 16
    %v127 = vadd.s32 %v105, 16
    %v128 = vadd.s32 %v112, 16
    %v129 = vsel %vm121, %v125, %v91
    %v130 = vsel %vm122, %v126, %v98
    %v131 = vsel %vm123, %v127, %v105
    %v132 = vsel %vm124, %v128, %v112
    %vm133 = vcmp.ne.s32.totalorder %v129, 0
    %vm134 = vcmp.ne.s32.totalorder %v130, 0
    %vm135 = vcmp.ne.s32.totalorder %v131, 0
    %vm136 = vcmp.ne.s32.totalorder %v132, 0
    %v137 = vsel %vm133, %v84, 0.0
    %v138 = vsel %vm134, %v83, 0.0
    %v139 = vsel %vm135, %v82, 0.0
    %v140 = vsel %vm136, %v81, 0.0
    %v141 = vpack.c.bf16 %v138, %v137
    %v142 = vpack.c.bf16 %v140, %v139
    %v143 = vrot.slane %v67, 1
    %v144 = vrot.slane %v68, 1
    %v145 = vrot.slane %v69, 1
    %v146 = vrot.slane %v70, 1
    %vm147 = vcmp.lt.s32.totalorder %v72, 7
    %v148 = vsel %vm147, %v145, %v146
    %v149 = vsel %vm147, %v144, %v145
    %v150 = vsel %vm147, %v143, %v144
    %v151 = vsel %vm147, %v146, %v143
    %vm152 = vcmp.ne.s32.totalorder %v129, 15
    %vm153 = vcmp.ne.s32.totalorder %v130, 15
    %vm154 = vcmp.ne.s32.totalorder %v131, 15
    %vm155 = vcmp.ne.s32.totalorder %v132, 15
    %v156 = vsel %vm152, %v150, 0.0
    %v157 = vsel %vm153, %v149, 0.0
    %v158 = vsel %vm154, %v148, 0.0
    %v159 = vsel %vm155, %v151, 0.0
    %v160 = vpack.c.bf16 %v157, %v156
    %v161 = vpack.c.bf16 %v159, %v158
    %v162 = vld [vmem:[#allocation5] sm:$0xff]
    %v163 = vld [vmem:[#allocation5 + $0x8] sm:$0xff]
    %v164 = vld [vmem:[#allocation5 + $0x10] sm:$0xff]
    %v165 = vld [vmem:[#allocation5 + $0x18] sm:$0xff]
    %v166 = vld [vmem:[#allocation5 + $0x20] sm:$0xff]
    %v167 = vld [vmem:[#allocation5 + $0x28] sm:$0xff]
    %v168 = vld [vmem:[#allocation5 + $0x30] sm:$0xff]
    %v169 = vld [vmem:[#allocation5 + $0x38] sm:$0xff]
    %s170 = scalar_lea.vmem [#allocation5], 64
    %v171 = vld [vmem:[%s170] sm:$0xff]
    %v172 = vld [vmem:[%s170 + $0x8] sm:$0xff]
    %v173 = vld [vmem:[%s170 + $0x10] sm:$0xff]
    %v174 = vld [vmem:[%s170 + $0x18] sm:$0xff]
    %v175 = vld [vmem:[%s170 + $0x20] sm:$0xff]
    %v176 = vld [vmem:[%s170 + $0x28] sm:$0xff]
    %v177 = vld [vmem:[%s170 + $0x30] sm:$0xff]
    %v178 = vld [vmem:[%s170 + $0x38] sm:$0xff]
    %v183 = vunpack.c.l.b16 %v63
    %v184 = vunpack.c.l.b16 %v64
    %v185 = vunpack.c.l.b16 %v65
    %v186 = vunpack.c.l.b16 %v66
    %v187 = vpack.c.b16 %v184, %v183
    %v188 = vpack.c.b16 %v186, %v185
    %v197 = vunpack.c.l.b16 %v171
    %v198 = vunpack.c.h.b16 %v171
    %v199 = vunpack.c.l.b16 %v172
    %v200 = vunpack.c.h.b16 %v172
    %v201 = vunpack.c.l.b16 %v173
    %v202 = vunpack.c.h.b16 %v173
    %v203 = vunpack.c.l.b16 %v174
    %v204 = vunpack.c.h.b16 %v174
    %v205 = vunpack.c.l.b16 %v175
    %v206 = vunpack.c.h.b16 %v175
    %v207 = vunpack.c.l.b16 %v176
    %v208 = vunpack.c.h.b16 %v176
    %v209 = vunpack.c.l.b16 %v177
    %v210 = vunpack.c.h.b16 %v177
    %v211 = vunpack.c.l.b16 %v178
    %v212 = vunpack.c.h.b16 %v178
    %v213 = vpack.c.b16 %v199, %v197
    %v214 = vpack.c.b16 %v200, %v198
    %v215 = vpack.c.b16 %v203, %v201
    %v216 = vpack.c.b16 %v204, %v202
    %v217 = vpack.c.b16 %v207, %v205
    %v218 = vpack.c.b16 %v208, %v206
    %v219 = vpack.c.b16 %v211, %v209
    %v220 = vpack.c.b16 %v212, %v210
    %vm229 = vcmask 523264
    %v231 = vsel %vm229, %v187, 0
    %v234 = vsel %vm229, %v188, 0
    %236 = vmatprep.subr.bf16.mxu0 %v214
    %237 = vmatpush1.bf16.msra.mxu0 %v213
    %238 = vmatprep.subr.bf16.mxu0 %v216
    %239 = vmatpush1.bf16.msra.mxu0 %v215
    %240 = vmatprep.subr.bf16.mxu0 %v218
    %241 = vmatpush1.bf16.msra.mxu0 %v217
    %242 = vmatprep.subr.bf16.mxu0 %v220
    %243 = vmatpush1.bf16.msra.mxu0 %v219
    %244 = vmatprep.subr.bf16.mxu0 0
    %245 = vmatpush1.bf16.msra.mxu0 0
    %246 = vmatprep.subr.bf16.mxu0 0
    %247 = vmatpush1.bf16.msra.mxu0 0
    %248 = vmatprep.subr.bf16.mxu0 0
    %249 = vmatpush1.bf16.msra.mxu0 0
    %250 = vmatprep.subr.bf16.mxu0 0
    %251 = vmatpush1.bf16.msra.mxu0 0
    %252 = vmatprep.subr.bf16.mxu0 0
    %253 = vmatpush1.bf16.msra.mxu0 0
    %254 = vmatprep.subr.bf16.mxu0 0
    %255 = vmatpush1.bf16.msra.mxu0 0
    %256 = vmatprep.subr.bf16.mxu0 0
    %257 = vmatpush1.bf16.msra.mxu0 0
    %258 = vmatprep.subr.bf16.mxu0 0
    %259 = vmatpush1.bf16.msra.mxu0 0
    %260 = vmatprep.subr.bf16.mxu0 0
    %261 = vmatpush1.bf16.msra.mxu0 0
    %262 = vmatprep.subr.bf16.mxu0 0
    %263 = vmatpush1.bf16.msra.mxu0 0
    %264 = vmatprep.subr.bf16.mxu0 0
    %265 = vmatpush1.bf16.msra.mxu0 0
    %266 = vmatprep.subr.bf16.mxu0 0
    %267 = vmatpush1.bf16.msra.mxu0 0
    %268 = vmatprep.mubr.bf16.mxu0 0
    %269 = vmatmul.mubr.bf16.gmra.mrb[0].mxu0 %v231
    %v270 = vpop.f32.mrb[0].mxu0
    %v271 = vadd.f32 0.0, %v270
    %v272 = vpop.f32.mrb[0].mxu0
    %v273 = vadd.f32 0.0, %v272
    %v274 = vpop.f32.mrb[0].mxu0
    %v275 = vadd.f32 0.0, %v274
    %v276 = vpop.f32.mrb[0].mxu0
    %v277 = vadd.f32 0.0, %v276
    %278 = vmatprep.mubr.bf16.mxu0 0
    %279 = vmatmul.mubr.bf16.gmra.mrb[0].mxu0 %v234
    %v280 = vpop.f32.mrb[0].mxu0
    %v281 = vadd.f32 0.0, %v280
    %v282 = vpop.f32.mrb[0].mxu0
    %v283 = vadd.f32 0.0, %v282
    %v284 = vpop.f32.mrb[0].mxu0
    %v285 = vadd.f32 0.0, %v284
    %v286 = vpop.f32.mrb[0].mxu0
    %v287 = vadd.f32 0.0, %v286
    %288 = vdwg.mxu0
    %v297 = vunpack.c.l.b16 %v162
    %v298 = vunpack.c.h.b16 %v162
    %v299 = vunpack.c.l.b16 %v163
    %v300 = vunpack.c.h.b16 %v163
    %v301 = vunpack.c.l.b16 %v164
    %v302 = vunpack.c.h.b16 %v164
    %v303 = vunpack.c.l.b16 %v165
    %v304 = vunpack.c.h.b16 %v165
    %v305 = vunpack.c.l.b16 %v166
    %v306 = vunpack.c.h.b16 %v166
    %v307 = vunpack.c.l.b16 %v167
    %v308 = vunpack.c.h.b16 %v167
    %v309 = vunpack.c.l.b16 %v168
    %v310 = vunpack.c.h.b16 %v168
    %v311 = vunpack.c.l.b16 %v169
    %v312 = vunpack.c.h.b16 %v169
    %v313 = vpack.c.b16 %v299, %v297
    %v314 = vpack.c.b16 %v300, %v298
    %v315 = vpack.c.b16 %v303, %v301
    %v316 = vpack.c.b16 %v304, %v302
    %v317 = vpack.c.b16 %v307, %v305
    %v318 = vpack.c.b16 %v308, %v306
    %v319 = vpack.c.b16 %v311, %v309
    %v320 = vpack.c.b16 %v312, %v310
    %v330 = vsel %vm229, %v141, 0
    %v333 = vsel %vm229, %v142, 0
    %335 = vmatprep.subr.bf16.mxu0 %v314
    %336 = vmatpush1.bf16.msra.mxu0 %v313
    %337 = vmatprep.subr.bf16.mxu0 %v316
    %338 = vmatpush1.bf16.msra.mxu0 %v315
    %339 = vmatprep.subr.bf16.mxu0 %v318
    %340 = vmatpush1.bf16.msra.mxu0 %v317
    %341 = vmatprep.subr.bf16.mxu0 %v320
    %342 = vmatpush1.bf16.msra.mxu0 %v319
    %343 = vmatprep.subr.bf16.mxu0 0
    %344 = vmatpush1.bf16.msra.mxu0 0
    %345 = vmatprep.subr.bf16.mxu0 0
    %346 = vmatpush1.bf16.msra.mxu0 0
    %347 = vmatprep.subr.bf16.mxu0 0
    %348 = vmatpush1.bf16.msra.mxu0 0
    %349 = vmatprep.subr.bf16.mxu0 0
    %350 = vmatpush1.bf16.msra.mxu0 0
    %351 = vmatprep.subr.bf16.mxu0 0
    %352 = vmatpush1.bf16.msra.mxu0 0
    %353 = vmatprep.subr.bf16.mxu0 0
    %354 = vmatpush1.bf16.msra.mxu0 0
    %355 = vmatprep.subr.bf16.mxu0 0
    %356 = vmatpush1.bf16.msra.mxu0 0
    %357 = vmatprep.subr.bf16.mxu0 0
    %358 = vmatpush1.bf16.msra.mxu0 0
    %359 = vmatprep.subr.bf16.mxu0 0
    %360 = vmatpush1.bf16.msra.mxu0 0
    %361 = vmatprep.subr.bf16.mxu0 0
    %362 = vmatpush1.bf16.msra.mxu0 0
    %363 = vmatprep.subr.bf16.mxu0 0
    %364 = vmatpush1.bf16.msra.mxu0 0
    %365 = vmatprep.subr.bf16.mxu0 0
    %366 = vmatpush1.bf16.msra.mxu0 0
    %367 = vmatprep.mubr.bf16.mxu0 0
    %368 = vmatmul.mubr.bf16.gmra.mrb[0].mxu0 %v330
    %v369 = vpop.f32.mrb[0].mxu0
    %v370 = vadd.f32 %v271, %v369
    %v371 = vpop.f32.mrb[0].mxu0
    %v372 = vadd.f32 %v273, %v371
    %v373 = vpop.f32.mrb[0].mxu0
    %v374 = vadd.f32 %v275, %v373
    %v375 = vpop.f32.mrb[0].mxu0
    %v376 = vadd.f32 %v277, %v375
    %377 = vmatprep.mubr.bf16.mxu0 0
    %378 = vmatmul.mubr.bf16.gmra.mrb[0].mxu0 %v333
    %v379 = vpop.f32.mrb[0].mxu0
    %v380 = vadd.f32 %v281, %v379
    %v381 = vpop.f32.mrb[0].mxu0
    %v382 = vadd.f32 %v283, %v381
    %v383 = vpop.f32.mrb[0].mxu0
    %v384 = vadd.f32 %v285, %v383
    %v385 = vpop.f32.mrb[0].mxu0
    %v386 = vadd.f32 %v287, %v385
    %387 = vdwg.mxu0
    %s388 = scalar_lea.vmem [#allocation5], 128
    %v389 = vld [vmem:[%s388] sm:$0xff]
    %v390 = vld [vmem:[%s388 + $0x8] sm:$0xff]
    %v391 = vld [vmem:[%s388 + $0x10] sm:$0xff]
    %v392 = vld [vmem:[%s388 + $0x18] sm:$0xff]
    %v393 = vld [vmem:[%s388 + $0x20] sm:$0xff]
    %v394 = vld [vmem:[%s388 + $0x28] sm:$0xff]
    %v395 = vld [vmem:[%s388 + $0x30] sm:$0xff]
    %v396 = vld [vmem:[%s388 + $0x38] sm:$0xff]
    %v405 = vunpack.c.l.b16 %v389
    %v406 = vunpack.c.h.b16 %v389
    %v407 = vunpack.c.l.b16 %v390
    %v408 = vunpack.c.h.b16 %v390
    %v409 = vunpack.c.l.b16 %v391
    %v410 = vunpack.c.h.b16 %v391
    %v411 = vunpack.c.l.b16 %v392
    %v412 = vunpack.c.h.b16 %v392
    %v413 = vunpack.c.l.b16 %v393
    %v414 = vunpack.c.h.b16 %v393
    %v415 = vunpack.c.l.b16 %v394
    %v416 = vunpack.c.h.b16 %v394
    %v417 = vunpack.c.l.b16 %v395
    %v418 = vunpack.c.h.b16 %v395
    %v419 = vunpack.c.l.b16 %v396
    %v420 = vunpack.c.h.b16 %v396
    %v421 = vpack.c.b16 %v407, %v405
    %v422 = vpack.c.b16 %v408, %v406
    %v423 = vpack.c.b16 %v411, %v409
    %v424 = vpack.c.b16 %v412, %v410
    %v425 = vpack.c.b16 %v415, %v413
    %v426 = vpack.c.b16 %v416, %v414
    %v427 = vpack.c.b16 %v419, %v417
    %v428 = vpack.c.b16 %v420, %v418
    %v438 = vsel %vm229, %v160, 0
    %v441 = vsel %vm229, %v161, 0
    %443 = vmatprep.subr.bf16.mxu0 %v422
    %444 = vmatpush1.bf16.msra.mxu0 %v421
    %445 = vmatprep.subr.bf16.mxu0 %v424
    %446 = vmatpush1.bf16.msra.mxu0 %v423
    %447 = vmatprep.subr.bf16.mxu0 %v426
    %448 = vmatpush1.bf16.msra.mxu0 %v425
    %449 = vmatprep.subr.bf16.mxu0 %v428
    %450 = vmatpush1.bf16.msra.mxu0 %v427
    %451 = vmatprep.subr.bf16.mxu0 0
    %452 = vmatpush1.bf16.msra.mxu0 0
    %453 = vmatprep.subr.bf16.mxu0 0
    %454 = vmatpush1.bf16.msra.mxu0 0
    %455 = vmatprep.subr.bf16.mxu0 0
    %456 = vmatpush1.bf16.msra.mxu0 0
    %457 = vmatprep.subr.bf16.mxu0 0
    %458 = vmatpush1.bf16.msra.mxu0 0
    %459 = vmatprep.subr.bf16.mxu0 0
    %460 = vmatpush1.bf16.msra.mxu0 0
    %461 = vmatprep.subr.bf16.mxu0 0
    %462 = vmatpush1.bf16.msra.mxu0 0
    %463 = vmatprep.subr.bf16.mxu0 0
    %464 = vmatpush1.bf16.msra.mxu0 0
    %465 = vmatprep.subr.bf16.mxu0 0
    %466 = vmatpush1.bf16.msra.mxu0 0
    %467 = vmatprep.subr.bf16.mxu0 0
    %468 = vmatpush1.bf16.msra.mxu0 0
    %469 = vmatprep.subr.bf16.mxu0 0
    %470 = vmatpush1.bf16.msra.mxu0 0
    %471 = vmatprep.subr.bf16.mxu0 0
    %472 = vmatpush1.bf16.msra.mxu0 0
    %473 = vmatprep.subr.bf16.mxu0 0
    %474 = vmatpush1.bf16.msra.mxu0 0
    %475 = vmatprep.mubr.bf16.mxu0 0
    %476 = vmatmul.mubr.bf16.gmra.mrb[0].mxu0 %v438
    %v477 = vpop.f32.mrb[0].mxu0
    %v478 = vadd.f32 0.0, %v477
    %v479 = vpop.f32.mrb[0].mxu0
    %v480 = vadd.f32 0.0, %v479
    %v481 = vpop.f32.mrb[0].mxu0
    %v482 = vadd.f32 0.0, %v481
    %v483 = vpop.f32.mrb[0].mxu0
    %v484 = vadd.f32 0.0, %v483
    %485 = vmatprep.mubr.bf16.mxu0 0
    %486 = vmatmul.mubr.bf16.gmra.mrb[0].mxu0 %v441
    %v487 = vpop.f32.mrb[0].mxu0
    %v488 = vadd.f32 0.0, %v487
    %v489 = vpop.f32.mrb[0].mxu0
    %v490 = vadd.f32 0.0, %v489
    %v491 = vpop.f32.mrb[0].mxu0
    %v492 = vadd.f32 0.0, %v491
    %v493 = vpop.f32.mrb[0].mxu0
    %v494 = vadd.f32 0.0, %v493
    %495 = vdwg.mxu0
    %v496 = vadd.f32 %v370, %v478
    %v497 = vadd.f32 %v372, %v480
    %v498 = vadd.f32 %v374, %v482
    %v499 = vadd.f32 %v376, %v484
    %v500 = vadd.f32 %v380, %v488
    %v501 = vadd.f32 %v382, %v490
    %v502 = vadd.f32 %v384, %v492
    %v503 = vadd.f32 %v386, %v494
    %v504 = vld [vmem:[%s2] sm:$0x3]
    %v506 = vlaneseq
    %v507 = vshrl.u32 %v506, 7
    %v508 = vsub.s32 0, %v507
    %v509 = vrot.slane %v504, %v508
    %v510 = vlaneseq
    %v511 = vshrl.u32 %v510, 7
    %v512 = vsub.s32 1, %v511
    %v513 = vrot.slane %v504, %v512
    %v516 = vadd.f32 %v496, %v509
    %v517 = vadd.f32 %v497, %v513
    %v518 = vadd.f32 %v498, %v509
    %v519 = vadd.f32 %v499, %v513
    %v520 = vadd.f32 %v500, %v509
    %v521 = vadd.f32 %v501, %v513
    %v522 = vadd.f32 %v502, %v509
    %v523 = vadd.f32 %v503, %v513
    %v524 = vmax.f32 %v516, 0.0
    %v525 = vmax.f32 %v518, 0.0
    %v526 = vmax.f32 %v520, 0.0
    %v527 = vmax.f32 %v522, 0.0
    %v528 = vrot.slane %v524, 7
    %v529 = vrot.slane %v525, 7
    %v530 = vrot.slane %v526, 7
    %v531 = vrot.slane %v527, 7
    %v532 = vsel %vm80, %v530, %v531
    %v533 = vsel %vm80, %v529, %v530
    %v534 = vsel %vm80, %v528, %v529
    %v535 = vsel %vm80, %v531, %v528
    %v536 = vsel %vm133, %v535, 0.0
    %v537 = vsel %vm134, %v534, 0.0
    %v538 = vsel %vm135, %v533, 0.0
    %v539 = vsel %vm136, %v532, 0.0
    %v540 = vpack.c.bf16 %v537, %v536
    %v541 = vpack.c.bf16 %v539, %v538
    %v542 = vrot.slane %v524, 1
    %v543 = vrot.slane %v525, 1
    %v544 = vrot.slane %v526, 1
    %v545 = vrot.slane %v527, 1
    %v546 = vsel %vm147, %v544, %v545
    %v547 = vsel %vm147, %v543, %v544
    %v548 = vsel %vm147, %v542, %v543
    %v549 = vsel %vm147, %v545, %v542
    %v550 = vsel %vm152, %v548, 0.0
    %v551 = vsel %vm153, %v547, 0.0
    %v552 = vsel %vm154, %v546, 0.0
    %v553 = vsel %vm155, %v549, 0.0
    %v554 = vpack.c.bf16 %v551, %v550
    %v555 = vpack.c.bf16 %v553, %v552
    %v556 = vld [vmem:[#allocation7] sm:$0xf]
    %v557 = vld [vmem:[#allocation7 + $0x4] sm:$0xf]
    %v558 = vld [vmem:[#allocation7 + $0x8] sm:$0xf]
    %v559 = vld [vmem:[#allocation7 + $0xc] sm:$0xf]
    %v560 = vld [vmem:[#allocation7 + $0x10] sm:$0xf]
    %v561 = vld [vmem:[#allocation7 + $0x14] sm:$0xf]
    %v562 = vld [vmem:[#allocation7 + $0x18] sm:$0xf]
    %v563 = vld [vmem:[#allocation7 + $0x1c] sm:$0xf]
    %v564 = vld [vmem:[#allocation7 + $0x20] sm:$0xf]
    %v565 = vld [vmem:[#allocation7 + $0x24] sm:$0xf]
    %v566 = vld [vmem:[#allocation7 + $0x28] sm:$0xf]
    %v567 = vld [vmem:[#allocation7 + $0x2c] sm:$0xf]
    %v568 = vld [vmem:[#allocation7 + $0x30] sm:$0xf]
    %v569 = vld [vmem:[#allocation7 + $0x34] sm:$0xf]
    %v570 = vld [vmem:[#allocation7 + $0x38] sm:$0xf]
    %v571 = vld [vmem:[#allocation7 + $0x3c] sm:$0xf]
    %v572 = vpack.c.bf16 %v525, %v524
    %v573 = vpack.c.bf16 %v527, %v526
    %s574 = scalar_lea.vmem [#allocation7], 64
    %v575 = vld [vmem:[%s574] sm:$0xf]
    %v576 = vld [vmem:[%s574 + $0x4] sm:$0xf]
    %v577 = vld [vmem:[%s574 + $0x8] sm:$0xf]
    %v578 = vld [vmem:[%s574 + $0xc] sm:$0xf]
    %v579 = vld [vmem:[%s574 + $0x10] sm:$0xf]
    %v580 = vld [vmem:[%s574 + $0x14] sm:$0xf]
    %v581 = vld [vmem:[%s574 + $0x18] sm:$0xf]
    %v582 = vld [vmem:[%s574 + $0x1c] sm:$0xf]
    %v583 = vld [vmem:[%s574 + $0x20] sm:$0xf]
    %v584 = vld [vmem:[%s574 + $0x24] sm:$0xf]
    %v585 = vld [vmem:[%s574 + $0x28] sm:$0xf]
    %v586 = vld [vmem:[%s574 + $0x2c] sm:$0xf]
    %v587 = vld [vmem:[%s574 + $0x30] sm:$0xf]
    %v588 = vld [vmem:[%s574 + $0x34] sm:$0xf]
    %v589 = vld [vmem:[%s574 + $0x38] sm:$0xf]
    %v590 = vld [vmem:[%s574 + $0x3c] sm:$0xf]
    %v607 = vunpack.c.l.b16 %v575
    %v608 = vunpack.c.l.b16 %v576
    %v609 = vunpack.c.l.b16 %v577
    %v610 = vunpack.c.l.b16 %v578
    %v611 = vunpack.c.l.b16 %v579
    %v612 = vunpack.c.l.b16 %v580
    %v613 = vunpack.c.l.b16 %v581
    %v614 = vunpack.c.l.b16 %v582
    %v615 = vunpack.c.l.b16 %v583
    %v616 = vunpack.c.l.b16 %v584
    %v617 = vunpack.c.l.b16 %v585
    %v618 = vunpack.c.l.b16 %v586
    %v619 = vunpack.c.l.b16 %v587
    %v620 = vunpack.c.l.b16 %v588
    %v621 = vunpack.c.l.b16 %v589
    %v622 = vunpack.c.l.b16 %v590
    %v623 = vpack.c.b16 %v608, %v607
    %v624 = vpack.c.b16 %v610, %v609
    %v625 = vpack.c.b16 %v612, %v611
    %v626 = vpack.c.b16 %v614, %v613
    %v627 = vpack.c.b16 %v616, %v615
    %v628 = vpack.c.b16 %v618, %v617
    %v629 = vpack.c.b16 %v620, %v619
    %v630 = vpack.c.b16 %v622, %v621
    %639 = vmatprep.subr.bf16.mxu0 0
    %640 = vmatpush1.bf16.msra.mxu0 %v623
    %641 = vmatprep.subr.bf16.mxu0 0
    %642 = vmatpush1.bf16.msra.mxu0 %v624
    %643 = vmatprep.subr.bf16.mxu0 0
    %644 = vmatpush1.bf16.msra.mxu0 %v625
    %645 = vmatprep.subr.bf16.mxu0 0
    %646 = vmatpush1.bf16.msra.mxu0 %v626
    %647 = vmatprep.subr.bf16.mxu0 0
    %648 = vmatpush1.bf16.msra.mxu0 %v627
    %649 = vmatprep.subr.bf16.mxu0 0
    %650 = vmatpush1.bf16.msra.mxu0 %v628
    %651 = vmatprep.subr.bf16.mxu0 0
    %652 = vmatpush1.bf16.msra.mxu0 %v629
    %653 = vmatprep.subr.bf16.mxu0 0
    %654 = vmatpush1.bf16.msra.mxu0 %v630
    %655 = vmatprep.subr.bf16.mxu0 0
    %656 = vmatpush1.bf16.msra.mxu0 0
    %657 = vmatprep.subr.bf16.mxu0 0
    %658 = vmatpush1.bf16.msra.mxu0 0
    %659 = vmatprep.subr.bf16.mxu0 0
    %660 = vmatpush1.bf16.msra.mxu0 0
    %661 = vmatprep.subr.bf16.mxu0 0
    %662 = vmatpush1.bf16.msra.mxu0 0
    %663 = vmatprep.subr.bf16.mxu0 0
    %664 = vmatpush1.bf16.msra.mxu0 0
    %665 = vmatprep.subr.bf16.mxu0 0
    %666 = vmatpush1.bf16.msra.mxu0 0
    %667 = vmatprep.subr.bf16.mxu0 0
    %668 = vmatpush1.bf16.msra.mxu0 0
    %669 = vmatprep.subr.bf16.mxu0 0
    %670 = vmatpush1.bf16.msra.mxu0 0
    %671 = vmatprep.mubr.bf16.mxu0 0
    %672 = vmatmul.mubr.bf16.gmra.mrb[0].mxu0 %v572
    %v673 = vpop.f32.mrb[0].mxu0
    %v674 = vadd.f32 0.0, %v673
    %v675 = vpop.f32.mrb[0].mxu0
    %v676 = vpop.f32.mrb[0].mxu0
    %v677 = vadd.f32 0.0, %v676
    %v678 = vpop.f32.mrb[0].mxu0
    %679 = vmatprep.mubr.bf16.mxu0 0
    %680 = vmatmul.mubr.bf16.gmra.mrb[0].mxu0 %v573
    %v681 = vpop.f32.mrb[0].mxu0
    %v682 = vadd.f32 0.0, %v681
    %v683 = vpop.f32.mrb[0].mxu0
    %v684 = vpop.f32.mrb[0].mxu0
    %v685 = vadd.f32 0.0, %v684
    %v686 = vpop.f32.mrb[0].mxu0
    %687 = vdwg.mxu0
    %v704 = vunpack.c.l.b16 %v556
    %v705 = vunpack.c.l.b16 %v557
    %v706 = vunpack.c.l.b16 %v558
    %v707 = vunpack.c.l.b16 %v559
    %v708 = vunpack.c.l.b16 %v560
    %v709 = vunpack.c.l.b16 %v561
    %v710 = vunpack.c.l.b16 %v562
    %v711 = vunpack.c.l.b16 %v563
    %v712 = vunpack.c.l.b16 %v564
    %v713 = vunpack.c.l.b16 %v565
    %v714 = vunpack.c.l.b16 %v566
    %v715 = vunpack.c.l.b16 %v567
    %v716 = vunpack.c.l.b16 %v568
    %v717 = vunpack.c.l.b16 %v569
    %v718 = vunpack.c.l.b16 %v570
    %v719 = vunpack.c.l.b16 %v571
    %v720 = vpack.c.b16 %v705, %v704
    %v721 = vpack.c.b16 %v707, %v706
    %v722 = vpack.c.b16 %v709, %v708
    %v723 = vpack.c.b16 %v711, %v710
    %v724 = vpack.c.b16 %v713, %v712
    %v725 = vpack.c.b16 %v715, %v714
    %v726 = vpack.c.b16 %v717, %v716
    %v727 = vpack.c.b16 %v719, %v718
    %736 = vmatprep.subr.bf16.mxu0 0
    %737 = vmatpush1.bf16.msra.mxu0 %v720
    %738 = vmatprep.subr.bf16.mxu0 0
    %739 = vmatpush1.bf16.msra.mxu0 %v721
    %740 = vmatprep.subr.bf16.mxu0 0
    %741 = vmatpush1.bf16.msra.mxu0 %v722
    %742 = vmatprep.subr.bf16.mxu0 0
    %743 = vmatpush1.bf16.msra.mxu0 %v723
    %744 = vmatprep.subr.bf16.mxu0 0
    %745 = vmatpush1.bf16.msra.mxu0 %v724
    %746 = vmatprep.subr.bf16.mxu0 0
    %747 = vmatpush1.bf16.msra.mxu0 %v725
    %748 = vmatprep.subr.bf16.mxu0 0
    %749 = vmatpush1.bf16.msra.mxu0 %v726
    %750 = vmatprep.subr.bf16.mxu0 0
    %751 = vmatpush1.bf16.msra.mxu0 %v727
    %752 = vmatprep.subr.bf16.mxu0 0
    %753 = vmatpush1.bf16.msra.mxu0 0
    %754 = vmatprep.subr.bf16.mxu0 0
    %755 = vmatpush1.bf16.msra.mxu0 0
    %756 = vmatprep.subr.bf16.mxu0 0
    %757 = vmatpush1.bf16.msra.mxu0 0
    %758 = vmatprep.subr.bf16.mxu0 0
    %759 = vmatpush1.bf16.msra.mxu0 0
    %760 = vmatprep.subr.bf16.mxu0 0
    %761 = vmatpush1.bf16.msra.mxu0 0
    %762 = vmatprep.subr.bf16.mxu0 0
    %763 = vmatpush1.bf16.msra.mxu0 0
    %764 = vmatprep.subr.bf16.mxu0 0
    %765 = vmatpush1.bf16.msra.mxu0 0
    %766 = vmatprep.subr.bf16.mxu0 0
    %767 = vmatpush1.bf16.msra.mxu0 0
    %768 = vmatprep.mubr.bf16.mxu0 0
    %769 = vmatmul.mubr.bf16.gmra.mrb[0].mxu0 %v540
    %v770 = vpop.f32.mrb[0].mxu0
    %v771 = vadd.f32 %v674, %v770
    %v772 = vpop.f32.mrb[0].mxu0
    %v773 = vpop.f32.mrb[0].mxu0
    %v774 = vadd.f32 %v677, %v773
    %v775 = vpop.f32.mrb[0].mxu0
    %776 = vmatprep.mubr.bf16.mxu0 0
    %777 = vmatmul.mubr.bf16.gmra.mrb[0].mxu0 %v541
    %v778 = vpop.f32.mrb[0].mxu0
    %v779 = vadd.f32 %v682, %v778
    %v780 = vpop.f32.mrb[0].mxu0
    %v781 = vpop.f32.mrb[0].mxu0
    %v782 = vadd.f32 %v685, %v781
    %v783 = vpop.f32.mrb[0].mxu0
    %784 = vdwg.mxu0
    %s785 = scalar_lea.vmem [#allocation7], 128
    %v786 = vld [vmem:[%s785] sm:$0xf]
    %v787 = vld [vmem:[%s785 + $0x4] sm:$0xf]
    %v788 = vld [vmem:[%s785 + $0x8] sm:$0xf]
    %v789 = vld [vmem:[%s785 + $0xc] sm:$0xf]
    %v790 = vld [vmem:[%s785 + $0x10] sm:$0xf]
    %v791 = vld [vmem:[%s785 + $0x14] sm:$0xf]
    %v792 = vld [vmem:[%s785 + $0x18] sm:$0xf]
    %v793 = vld [vmem:[%s785 + $0x1c] sm:$0xf]
    %v794 = vld [vmem:[%s785 + $0x20] sm:$0xf]
    %v795 = vld [vmem:[%s785 + $0x24] sm:$0xf]
    %v796 = vld [vmem:[%s785 + $0x28] sm:$0xf]
    %v797 = vld [vmem:[%s785 + $0x2c] sm:$0xf]
    %v798 = vld [vmem:[%s785 + $0x30] sm:$0xf]
    %v799 = vld [vmem:[%s785 + $0x34] sm:$0xf]
    %v800 = vld [vmem:[%s785 + $0x38] sm:$0xf]
    %v801 = vld [vmem:[%s785 + $0x3c] sm:$0xf]
    %v818 = vunpack.c.l.b16 %v786
    %v819 = vunpack.c.l.b16 %v787
    %v820 = vunpack.c.l.b16 %v788
    %v821 = vunpack.c.l.b16 %v789
    %v822 = vunpack.c.l.b16 %v790
    %v823 = vunpack.c.l.b16 %v791
    %v824 = vunpack.c.l.b16 %v792
    %v825 = vunpack.c.l.b16 %v793
    %v826 = vunpack.c.l.b16 %v794
    %v827 = vunpack.c.l.b16 %v795
    %v828 = vunpack.c.l.b16 %v796
    %v829 = vunpack.c.l.b16 %v797
    %v830 = vunpack.c.l.b16 %v798
    %v831 = vunpack.c.l.b16 %v799
    %v832 = vunpack.c.l.b16 %v800
    %v833 = vunpack.c.l.b16 %v801
    %v834 = vpack.c.b16 %v819, %v818
    %v835 = vpack.c.b16 %v821, %v820
    %v836 = vpack.c.b16 %v823, %v822
    %v837 = vpack.c.b16 %v825, %v824
    %v838 = vpack.c.b16 %v827, %v826
    %v839 = vpack.c.b16 %v829, %v828
    %v840 = vpack.c.b16 %v831, %v830
    %v841 = vpack.c.b16 %v833, %v832
    %850 = vmatprep.subr.bf16.mxu0 0
    %851 = vmatpush1.bf16.msra.mxu0 %v834
    %852 = vmatprep.subr.bf16.mxu0 0
    %853 = vmatpush1.bf16.msra.mxu0 %v835
    %854 = vmatprep.subr.bf16.mxu0 0
    %855 = vmatpush1.bf16.msra.mxu0 %v836
    %856 = vmatprep.subr.bf16.mxu0 0
    %857 = vmatpush1.bf16.msra.mxu0 %v837
    %858 = vmatprep.subr.bf16.mxu0 0
    %859 = vmatpush1.bf16.msra.mxu0 %v838
    %860 = vmatprep.subr.bf16.mxu0 0
    %861 = vmatpush1.bf16.msra.mxu0 %v839
    %862 = vmatprep.subr.bf16.mxu0 0
    %863 = vmatpush1.bf16.msra.mxu0 %v840
    %864 = vmatprep.subr.bf16.mxu0 0
    %865 = vmatpush1.bf16.msra.mxu0 %v841
    %866 = vmatprep.subr.bf16.mxu0 0
    %867 = vmatpush1.bf16.msra.mxu0 0
    %868 = vmatprep.subr.bf16.mxu0 0
    %869 = vmatpush1.bf16.msra.mxu0 0
    %870 = vmatprep.subr.bf16.mxu0 0
    %871 = vmatpush1.bf16.msra.mxu0 0
    %872 = vmatprep.subr.bf16.mxu0 0
    %873 = vmatpush1.bf16.msra.mxu0 0
    %874 = vmatprep.subr.bf16.mxu0 0
    %875 = vmatpush1.bf16.msra.mxu0 0
    %876 = vmatprep.subr.bf16.mxu0 0
    %877 = vmatpush1.bf16.msra.mxu0 0
    %878 = vmatprep.subr.bf16.mxu0 0
    %879 = vmatpush1.bf16.msra.mxu0 0
    %880 = vmatprep.subr.bf16.mxu0 0
    %881 = vmatpush1.bf16.msra.mxu0 0
    %882 = vmatprep.mubr.bf16.mxu0 0
    %883 = vmatmul.mubr.bf16.gmra.mrb[0].mxu0 %v554
    %v884 = vpop.f32.mrb[0].mxu0
    %v885 = vadd.f32 0.0, %v884
    %v886 = vpop.f32.mrb[0].mxu0
    %v887 = vpop.f32.mrb[0].mxu0
    %v888 = vadd.f32 0.0, %v887
    %v889 = vpop.f32.mrb[0].mxu0
    %890 = vmatprep.mubr.bf16.mxu0 0
    %891 = vmatmul.mubr.bf16.gmra.mrb[0].mxu0 %v555
    %v892 = vpop.f32.mrb[0].mxu0
    %v893 = vadd.f32 0.0, %v892
    %v894 = vpop.f32.mrb[0].mxu0
    %v895 = vpop.f32.mrb[0].mxu0
    %v896 = vadd.f32 0.0, %v895
    %v897 = vpop.f32.mrb[0].mxu0
    %898 = vdwg.mxu0
    %v899 = vadd.f32 %v771, %v885
    %v900 = vadd.f32 %v774, %v888
    %v901 = vadd.f32 %v779, %v893
    %v902 = vadd.f32 %v782, %v896
    %v903 = vld [vmem:[%s4] sm:$0x1]
    %v905 = vlaneseq
    %v906 = vshrl.u32 %v905, 7
    %v907 = vsub.s32 0, %v906
    %v908 = vrot.slane %v903, %v907
    %v910 = vadd.f32 %v899, %v908
    %v911 = vadd.f32 %v900, %v908
    %v912 = vadd.f32 %v901, %v908
    %v913 = vadd.f32 %v902, %v908
    %v914 = vadd.f32 %v910, %v517
    %v915 = vadd.f32 %v911, %v519
    %v916 = vadd.f32 %v912, %v521
    %v917 = vadd.f32 %v913, %v523
    %v918 = vmax.f32 %v914, 0.0
    %v919 = vmax.f32 %v915, 0.0
    %v920 = vmax.f32 %v916, 0.0
    %v921 = vmax.f32 %v917, 0.0
    %v922 = vpack.c.bf16 %v919, %v918
    %v923 = vpack.c.bf16 %v921, %v920
    %v926 = vunpack.c.l.b16 %v922
    %v927 = vunpack.c.h.b16 %v922
    %v928 = vunpack.c.l.b16 %v923
    %v929 = vunpack.c.h.b16 %v923
    %v930 = vpack.c.b16 %v926, %v926
    %v931 = vpack.c.b16 %v927, %v927
    %v932 = vpack.c.b16 %v928, %v928
    %v933 = vpack.c.b16 %v929, %v929
    %938 = vst [vmem:[#allocation8] sm:$0xf] %v930
    %939 = vst [vmem:[#allocation8 + $0x4] sm:$0xf] %v931
    %940 = vst [vmem:[#allocation8 + $0x8] sm:$0xf] %v932
    %941 = vst [vmem:[#allocation8 + $0xc] sm:$0xf] %v933
    // Predicated region
    $region34: #{tpu_custom_call.1} parent=1 // pred_check
      _
    $region35: #{tpu_custom_call.1} parent=1 // pred_check_branch
      %943 = sbr.rel (0) target = $region37
    $region36: #{tpu_custom_call.1} parent=1 // pred_region
      %s945 = ssub.s32 256, 256
      %946 = vsyncadd [#allocation4], %s945
      %s947 = sshll.u32 [#allocation8], 4
      %s948 = int_to_ptr.vmem [resolvable:$true] %s947
      %953 = dma.vmem_to_hbm [thread:$0]  %s948, 256, %s5, [#allocation4], 64, 64, 4
    $region37: #{tpu_custom_call.1} parent=1 // pred_fallthru
      _
    // Predicated region
    $region38: #{tpu_custom_call.1} parent=1 // pred_check
      _
    $region39: #{tpu_custom_call.1} parent=1 // pred_check_branch
      %955 = sbr.rel (0) target = $region41
    $region40: #{tpu_custom_call.1} parent=1 // pred_region
      %956 = dma.done [#allocation4], 256
    $region41: #{tpu_custom_call.1} parent=1 // pred_fallthru
      _
    %957 = vsyncpa [#allocation3], 1
    %958 = vsyncpa [#allocation6], 1
    %959 = vsyncpa [#allocation4], 1

</llo_original>
